<compile_context>
chip_gen: v7x
topology: tpu7x:2x2x1
jax: 0.10.0
libtpu: 0.0.40
codegen_flags: <defaults>
</compile_context>

<pallas_src>
from typing import NamedTuple

import numpy as np
import jax
import jax.numpy as jnp
from jax.experimental import pallas as pl
from jax.experimental.pallas import tpu as pltpu


def _round_up(x, m):
    return ((x + m - 1) // m) * m


def _pick_tile(dim, granularity, target):
    """Pick a tile (multiple of `granularity`) that minimizes round_up(dim, tile).

    If the whole (granularity-rounded) dim fits under `target`, use a single
    block. Otherwise search candidates <= target and minimize padded size,
    breaking ties towards the largest tile (fewer grid steps).
    """
    dim = max(int(dim), 1)
    padded_full = _round_up(dim, granularity)
    if padded_full <= target:
        return padded_full
    best_tile = granularity
    best_pad = _round_up(dim, best_tile)   # minimum achievable padded size
    tile = granularity
    while tile + granularity <= target:
        tile += granularity
        pad = _round_up(dim, tile)
        if pad <= best_pad:                # tie -> larger tile wins
            best_pad, best_tile = pad, tile
    return best_tile


class FeatureExtractorPlan(NamedTuple):
    M: int
    K: int
    N: int
    Mp: int
    Kp: int
    Np: int
    tm: int
    tk: int
    tn: int


def plan_feature_extractor(M, K, N, *, tm_target=256, tn_target=1024,
                           tk_target=1024, split_n_for_two_cores=True):
    """Choose tiles / padded dims for relu(x[M,K] @ W[K,N] + b[N])."""
    tm = _pick_tile(M, 16, tm_target)     # 16: bf16 sublane packing
    tk = _pick_tile(K, 128, tk_target)    # lane-dense K tiles
    tn = _pick_tile(N, 128, tn_target)    # lane-dense N tiles (unmasked vst)
    Mp, Kp, Np = _round_up(M, tm), _round_up(K, tk), _round_up(N, tn)
    # v7x has two TensorCores: make sure a "parallel" grid axis has >= 2 blocks
    # when N is big enough, otherwise one core idles for the whole kernel.
    if (split_n_for_two_cores and Mp // tm == 1 and Np // tn == 1
            and Np >= 256 and Np % 256 == 0):
        tn = Np // 2
    return FeatureExtractorPlan(M, K, N, Mp, Kp, Np, tm, tk, tn)


def prepare_feature_extractor_params(w, b, plan):
    """One-time (weight-stationary) bf16 cast + zero-pad of the Linear params.

    w: [input_size, output_size] float32  (transpose of PyTorch weight [out, in])
    b: [output_size] float32
    Zero padding is exact for matmul+bias+ReLU (padded K rows contribute 0,
    padded N columns produce relu(0)=0 and are sliced off in forward).
    """
    K, N = w.shape
    assert (K, N) == (plan.K, plan.N) and b.shape == (N,)
    if (plan.Kp, plan.Np) == (K, N):
        wp = w.astype(jnp.bfloat16)
    else:
        wp = (jnp.zeros((plan.Kp, plan.Np), jnp.bfloat16)
              .at[:K, :N].set(w.astype(jnp.bfloat16)))
    if plan.Np == N:
        bp = b.astype(jnp.float32).reshape(1, N)
    else:
        bp = (jnp.zeros((1, plan.Np), jnp.float32)
              .at[0, :N].set(b.astype(jnp.float32)))
    return wp, bp


def _fc_relu_kernel(x_ref, w_ref, b_ref, o_ref, acc_ref):
    # out = relu(x @ W + b), K-streamed with an f32 VMEM accumulator.
    k = pl.program_id(2)

    @pl.when(k == 0)
    def _init():
        # Fold the bias into the mandatory accumulator init (broadcast rows).
        acc_ref[...] = jnp.broadcast_to(b_ref[...], acc_ref.shape).astype(jnp.float32)

    acc_ref[...] += jnp.dot(
        x_ref[...], w_ref[...], preferred_element_type=jnp.float32
    )

    @pl.when(k == pl.num_programs(2) - 1)
    def _finalize():
        # f32 epilogue, single cast at the store.
        o_ref[...] = jnp.maximum(acc_ref[...], 0.0).astype(o_ref.dtype)


def _pallas_fc_relu(xp, wp, bp, plan, out_dtype, buffered_weights):
    tm, tk, tn = plan.tm, plan.tk, plan.tn
    Mp, Kp, Np = plan.Mp, plan.Kp, plan.Np

    w_spec_kwargs = {}
    if buffered_weights:
        # GEMV-like (single M block): weight streaming is the long pole; a
        # third buffer hides DMA bubbles at K-tile boundaries.
        w_spec_kwargs = dict(pipeline_mode=pl.Buffered(3))

    out_itemsize = np.dtype(out_dtype).itemsize
    cost = pl.CostEstimate(
        flops=2 * Mp * Np * Kp,
        transcendentals=0,
        bytes_accessed=(xp.size * 2 + wp.size * 2 + bp.size * 4
                        + Mp * Np * out_itemsize),
    )

    return pl.pallas_call(
        _fc_relu_kernel,
        out_shape=jax.ShapeDtypeStruct((Mp, Np), out_dtype),
        grid_spec=pltpu.PrefetchScalarGridSpec(
            num_scalar_prefetch=0,
            grid=(Mp // tm, Np // tn, Kp // tk),
            in_specs=[
                pl.BlockSpec((tm, tk), lambda i, j, k: (i, k)),    # activations
                pl.BlockSpec((tk, tn), lambda i, j, k: (k, j),     # weights
                             **w_spec_kwargs),
                pl.BlockSpec((1, tn), lambda i, j, k: (0, j)),     # bias
            ],
            out_specs=pl.BlockSpec((tm, tn), lambda i, j, k: (i, j)),
            scratch_shapes=[pltpu.VMEM((tm, tn), jnp.float32)],
        ),
        compiler_params=pltpu.CompilerParams(
            # M/N parallel (megacore sharding on v7x), K reduction last.
            dimension_semantics=("parallel", "parallel", "arbitrary"),
            # ~12 MiB working set at the default tiles; 48 MiB leaves
            # double/triple-buffer headroom, stays under v7x's 64 MiB VMEM and
            # raises v5e's 16 MiB default scoped limit.
            vmem_limit_bytes=48 * 1024 * 1024,
        ),
        cost_estimate=cost,
    )(xp, wp, bp)


def feature_extractor_forward(x, wp, bp, plan, *, out_dtype=jnp.float32):
    """relu(x @ W + b) with pre-prepared (cast/padded, weight-stationary) params."""
    M, K = x.shape
    assert (M, K) == (plan.M, plan.K)
    assert wp.shape == (plan.Kp, plan.Np) and bp.shape == (1, plan.Np)

    if (plan.Mp, plan.Kp) == (M, K):
        xp = x.astype(jnp.bfloat16)            # aligned: skip pad round-trip
    else:
        xp = (jnp.zeros((plan.Mp, plan.Kp), jnp.bfloat16)
              .at[:M, :K].set(x.astype(jnp.bfloat16)))

    gemv_like = plan.Mp // plan.tm == 1
    if gemv_like:
        try:
            out = jax.block_until_ready(
                _pallas_fc_relu(xp, wp, bp, plan, out_dtype, buffered_weights=True))
        except Exception:
            # pipeline_mode=pl.Buffered(3) unsupported here -> plain double buffer.
            out = _pallas_fc_relu(xp, wp, bp, plan, out_dtype, buffered_weights=False)
    else:
        out = _pallas_fc_relu(xp, wp, bp, plan, out_dtype, buffered_weights=False)

    if (plan.Mp, plan.Np) != (plan.M, plan.N):
        out = out[:plan.M, :plan.N]            # aligned shapes skip this slice
    return out


def feature_extractor_apply(x, w, b, output_size, *, out_dtype=jnp.float32,
                            **plan_kwargs):
    """One-shot convenience: plan + prepare + forward (matches module.forward)."""
    if output_size == 0:
        # matches `return torch.zeros(0)` — plain-JAX glue, no kernel needed.
        return jnp.zeros((0,), dtype=jnp.float32)
    M, K = x.shape
    plan = plan_feature_extractor(M, K, output_size, **plan_kwargs)
    wp, bp = prepare_feature_extractor_params(w, b, plan)
    return feature_extractor_forward(x, wp, bp, plan, out_dtype=out_dtype)


def _ref_forward_bf16(x, w, b):
    # Pure-JAX reference with the same bf16 input rounding the kernel uses.
    xb = x.astype(jnp.bfloat16).astype(jnp.float32)
    wb = w.astype(jnp.bfloat16).astype(jnp.float32)
    return jnp.maximum(xb @ wb + b[None, :], 0.0)


if __name__ == "__main__":
    key = jax.random.PRNGKey(0)
    k_x, k_w, k_b, k_x2, k_w2, k_b2 = jax.random.split(key, 6)

    # ---- Test 1: module-sized shape (batch=8, input=32, output=32) ----------
    # Unaligned -> exercises the pad + slice path; weights prepared once.
    batch, in1, out1 = 8, 32, 32
    bound = 1.0 / jnp.sqrt(jnp.float32(in1))
    w = jax.random.uniform(k_w, (in1, out1), jnp.float32, minval=-bound, maxval=bound)
    b = jax.random.uniform(k_b, (out1,), jnp.float32, minval=-bound, maxval=bound)
    x = jax.random.normal(k_x, (batch, in1), jnp.float32)

    plan1 = plan_feature_extractor(batch, in1, out1)
    wp1, bp1 = prepare_feature_extractor_params(w, b, plan1)   # weight-stationary
    y1 = jax.block_until_ready(feature_extractor_forward(x, wp1, bp1, plan1))
    ref1 = _ref_forward_bf16(x, w, b)
    assert y1.shape == (batch, out1)
    assert jnp.allclose(y1, ref1, atol=1e-3, rtol=1e-3)

    # ---- Test 2: multi-tile grid (K accumulation + N split into 2 blocks) ---
    # tk_target=256 is a correctness-only config to force Kp//tk == 2 at small
    # size; real configs keep tk >= 512 (the default target is 1024).
    batch2, in2, out2 = 32, 512, 256
    bound2 = 1.0 / jnp.sqrt(jnp.float32(in2))
    w2 = jax.random.uniform(k_w2, (in2, out2), jnp.float32, minval=-bound2, maxval=bound2)
    b2 = jax.random.uniform(k_b2, (out2,), jnp.float32, minval=-bound2, maxval=bound2)
    x2 = jax.random.normal(k_x2, (batch2, in2), jnp.float32)

    plan2 = plan_feature_extractor(batch2, in2, out2, tk_target=256)
    assert plan2.Kp // plan2.tk == 2 and plan2.Np // plan2.tn == 2
    wp2, bp2 = prepare_feature_extractor_params(w2, b2, plan2)
    y2 = jax.block_until_ready(feature_extractor_forward(x2, wp2, bp2, plan2))
    ref2 = _ref_forward_bf16(x2, w2, b2)
    assert y2.shape == (batch2, out2)
    assert jnp.allclose(y2, ref2, atol=2e-3, rtol=2e-3)

    # ---- Test 3: output_size == 0 branch (plain-JAX glue) -------------------
    empty = jax.block_until_ready(feature_extractor_apply(x, w, b, 0))
    assert empty.shape == (0,)

    print("KERNEL_OK")
</pallas_src>

<mosaic_0001>
module attributes {stable_mosaic.version = 11 : i64} {
  func.func @_fc_relu_kernel(%arg0: i32, %arg1: i32, %arg2: i32, %arg3: memref<16x128xbf16, #tpu.memory_space<vmem>>, %arg4: memref<128x128xbf16, #tpu.memory_space<vmem>>, %arg5: memref<1x128xf32, #tpu.memory_space<vmem>>, %arg6: memref<16x128xf32, #tpu.memory_space<vmem>>, %arg7: memref<16x128xf32, #tpu.memory_space<vmem>>) attributes {dimension_semantics = [#tpu.dimension_semantics<parallel>, #tpu.dimension_semantics<parallel>, #tpu.dimension_semantics<arbitrary>], iteration_bounds = array<i64: 1, 1, 1>, scalar_prefetch = 0 : i64, scratch_operands = 1 : i64, tpu.core_type = #tpu.core_type<tc>, window_params = [{transform_indices = @transform_0, window_bounds = array<i64: 16, 128>}, {transform_indices = @transform_1, window_bounds = array<i64: 128, 128>}, {transform_indices = @transform_2, window_bounds = array<i64: 1, 128>}, {transform_indices = @transform_3, window_bounds = array<i64: 16, 128>}]} {
    %c0_i32 = arith.constant 0 : i32
    %0 = arith.cmpi eq, %arg2, %c0_i32 : i32
    %1 = arith.extui %0 : i1 to i32
    %c0_i32_0 = arith.constant 0 : i32
    %2 = arith.cmpi ne, %1, %c0_i32_0 : i32
    scf.if %2 {
      %c0_10 = arith.constant 0 : index
      %c0_11 = arith.constant 0 : index
      %12 = vector.load %arg5[%c0_10, %c0_11] : memref<1x128xf32, #tpu.memory_space<vmem>>, vector<1x128xf32>
      %13 = vector.shape_cast %12 : vector<1x128xf32> to vector<1x128xf32>
      %14 = vector.broadcast %13 : vector<1x128xf32> to vector<16x128xf32>
      %c0_12 = arith.constant 0 : index
      %c0_13 = arith.constant 0 : index
      %15 = vector.load %arg7[%c0_12, %c0_13] : memref<16x128xf32, #tpu.memory_space<vmem>>, vector<16x128xf32>
      tpu.vector_store %arg7[%c0_12, %c0_13], %14 {strides = array<i32>} : memref<16x128xf32, #tpu.memory_space<vmem>>, vector<16x128xf32>,
    } else {
    }
    %c0 = arith.constant 0 : index
    %c0_1 = arith.constant 0 : index
    %3 = vector.load %arg7[%c0, %c0_1] : memref<16x128xf32, #tpu.memory_space<vmem>>, vector<16x128xf32>
    %c0_2 = arith.constant 0 : index
    %c0_3 = arith.constant 0 : index
    %4 = vector.load %arg3[%c0_2, %c0_3] : memref<16x128xbf16, #tpu.memory_space<vmem>>, vector<16x128xbf16>
    %c0_4 = arith.constant 0 : index
    %c0_5 = arith.constant 0 : index
    %5 = vector.load %arg4[%c0_4, %c0_5] : memref<128x128xbf16, #tpu.memory_space<vmem>>, vector<128x128xbf16>
    %cst = arith.constant dense<0.000000e+00> : vector<16x128xf32>
    %6 = tpu.matmul %4, %5, %cst {dimension_numbers = #tpu.dot_dimension_numbers<[1], [0], [0], [1], [0, 0, 1, 1], [], []>} : vector<16x128xbf16>, vector<128x128xbf16>, vector<16x128xf32> -> vector<16x128xf32>
    %7 = arith.addf %3, %6 : vector<16x128xf32>
    %c0_6 = arith.constant 0 : index
    %c0_7 = arith.constant 0 : index
    %8 = vector.load %arg7[%c0_6, %c0_7] : memref<16x128xf32, #tpu.memory_space<vmem>>, vector<16x128xf32>
    tpu.vector_store %arg7[%c0_6, %c0_7], %7 {strides = array<i32>} : memref<16x128xf32, #tpu.memory_space<vmem>>, vector<16x128xf32>,
    %c0_i32_8 = arith.constant 0 : i32
    %9 = arith.cmpi eq, %arg2, %c0_i32_8 : i32
    %10 = arith.extui %9 : i1 to i32
    %c0_i32_9 = arith.constant 0 : i32
    %11 = arith.cmpi ne, %10, %c0_i32_9 : i32
    scf.if %11 {
      %c0_10 = arith.constant 0 : index
      %c0_11 = arith.constant 0 : index
      %12 = vector.load %arg7[%c0_10, %c0_11] : memref<16x128xf32, #tpu.memory_space<vmem>>, vector<16x128xf32>
      %cst_12 = arith.constant 0.000000e+00 : f32
      %13 = vector.broadcast %cst_12 : f32 to vector<16x128xf32>
      %14 = arith.maximumf %12, %13 : vector<16x128xf32>
      %c0_13 = arith.constant 0 : index
      %c0_14 = arith.constant 0 : index
      %15 = vector.load %arg6[%c0_13, %c0_14] : memref<16x128xf32, #tpu.memory_space<vmem>>, vector<16x128xf32>
      tpu.vector_store %arg6[%c0_13, %c0_14], %14 {strides = array<i32>} : memref<16x128xf32, #tpu.memory_space<vmem>>, vector<16x128xf32>,
    } else {
    }
    return
  }
  func.func @transform_0(%arg0: i32, %arg1: i32, %arg2: i32) -> (i32, i32) {
    %c0_i32 = arith.constant 0 : i32
    return %arg0, %arg2 : i32, i32
  }
  func.func @transform_1(%arg0: i32, %arg1: i32, %arg2: i32) -> (i32, i32) {
    %c0_i32 = arith.constant 0 : i32
    return %arg2, %arg1 : i32, i32
  }
  func.func @transform_2(%arg0: i32, %arg1: i32, %arg2: i32) -> (i32, i32) {
    %c0_i32 = arith.constant 0 : i32
    %c0_i32_0 = arith.constant 0 : i32
    return %c0_i32, %arg1 : i32, i32
  }
  func.func @transform_3(%arg0: i32, %arg1: i32, %arg2: i32) -> (i32, i32) {
    %c0_i32 = arith.constant 0 : i32
    return %arg0, %arg1 : i32, i32
  }
}

</mosaic_0001>

<llo_original>
// kernel: tpu_custom_call.1
$region0: #{tpu_custom_call.1}
  #allocation0 [shape = 'u32[]', space=smem, size = 0x4, offset = 0x4, fixed_abs, tag = 'smem constant byte address 0x4 - core index']
  #allocation1 [shape = 'u32[144,128]{1,0:T(1,128)}', space=vmem, size = 0x12000, scoped, tag = 'internal scratch']
  #allocation2 [shape = 'f32[16,128]{1,0:T(8,128)}', space=vmem, size = 0x2000, scoped, tag = 'scratch operand']
  %s0 = inlined_call_operand.hbm [shape: bf16[16,128], index: 0, kind: input, shape index: {}]
  %s1 = inlined_call_operand.hbm [shape: bf16[128,128], index: 1, kind: input, shape index: {}]
  %s2 = inlined_call_operand.vmem [shape: f32[1,128], index: 2, kind: input, shape index: {}]
  %s3 = inlined_call_operand.hbm [shape: f32[16,128], index: 3, kind: output, shape index: {}]
  %s4 = sld [smem:[#allocation0]]
  $region38: #{tpu_custom_call.1} parent=0
    _
  %s6 = ssub.s32 1, %s4
  %s7 = scalar_select 0, %s6, %s4
  $region1: #{tpu_custom_call.1} parent=0
    #allocation3 [shape = 'u8[4096]{0}', space=vmem, size = 0x1000, scoped, tag = 'input window, operand 0, single buffered']
    #allocation4 [shape = 's32[1]{0}', space=sflag, size = 0x4, scoped, tag = 'scoped memory for tpu_custom_call.1']
    #allocation5 [shape = 's32[1]{0}', space=sflag, size = 0x4, scoped, tag = 'scoped memory for tpu_custom_call.1']
    #allocation6 [shape = 'u8[32768]{0}', space=vmem, size = 0x8000, scoped, tag = 'input window, operand 1, single buffered']
    #allocation7 [shape = 's32[1]{0}', space=sflag, size = 0x4, scoped, tag = 'scoped memory for tpu_custom_call.1']
    #allocation8 [shape = 'u8[8192]{0}', space=vmem, size = 0x2000, scoped, tag = 'output window, operand 0, single buffered']
    %8 = vsyncpa [#allocation4], 0
    %9 = vsyncpa [#allocation7], 0
    %10 = vsyncpa [#allocation5], 0
    // Predicated region
    $region2: #{tpu_custom_call.1} parent=1 // pred_check
      _
    $region3: #{tpu_custom_call.1} parent=1 // pred_check_branch
      %12 = sbr.rel (0) target = $region5
    $region4: #{tpu_custom_call.1} parent=1 // pred_region
      %s14 = ssub.s32 128, 128
      %15 = vsyncadd [#allocation4], %s14
      %s16 = sshll.u32 [#allocation3], 4
      %s17 = int_to_ptr.vmem [resolvable:$true] %s16
      %22 = dma.hbm_to_vmem [thread:$0]  %s0, 128, %s17, [#allocation4], 64, 64, 4
    $region5: #{tpu_custom_call.1} parent=1 // pred_fallthru
      _
    // Predicated region
    $region6: #{tpu_custom_call.1} parent=1 // pred_check
      _
    $region7: #{tpu_custom_call.1} parent=1 // pred_check_branch
      %24 = sbr.rel (0) target = $region9
    $region8: #{tpu_custom_call.1} parent=1 // pred_region
      %s26 = ssub.s32 1024, 1024
      %27 = vsyncadd [#allocation7], %s26
      %s28 = sshll.u32 [#allocation6], 4
      %s29 = int_to_ptr.vmem [resolvable:$true] %s28
      %34 = dma.hbm_to_vmem [thread:$0]  %s1, 1024, %s29, [#allocation7], 64, 64, 4
    $region9: #{tpu_custom_call.1} parent=1 // pred_fallthru
      _
    // Predicated region
    $region10: #{tpu_custom_call.1} parent=1 // pred_check
      _
    $region11: #{tpu_custom_call.1} parent=1 // pred_check_branch
      %36 = sbr.rel (0) target = $region13
    $region12: #{tpu_custom_call.1} parent=1 // pred_region
      _
    $region13: #{tpu_custom_call.1} parent=1 // pred_fallthru
      _
    // Predicated region
    $region14: #{tpu_custom_call.1} parent=1 // pred_check
      _
    $region15: #{tpu_custom_call.1} parent=1 // pred_check_branch
      %38 = sbr.rel (0) target = $region17
    $region16: #{tpu_custom_call.1} parent=1 // pred_region
      %39 = dma.done [#allocation4], 128
    $region17: #{tpu_custom_call.1} parent=1 // pred_fallthru
      _
    // Predicated region
    $region18: #{tpu_custom_call.1} parent=1 // pred_check
      _
    $region19: #{tpu_custom_call.1} parent=1 // pred_check_branch
      %41 = sbr.rel (0) target = $region21
    $region20: #{tpu_custom_call.1} parent=1 // pred_region
      %42 = dma.done [#allocation7], 1024
    $region21: #{tpu_custom_call.1} parent=1 // pred_fallthru
      _
    %p44 = scmp.eq.s32.totalorder 0, 0
    // Predicated region
    $region22: #{tpu_custom_call.1} parent=1 // pred_check
      %p45 = pneg %p44
    $region23: #{tpu_custom_call.1} parent=1 // pred_check_branch
      %47 = sbr.rel (%p45) target = $region25
    $region24: #{tpu_custom_call.1} parent=1 // pred_region
      %v48 = vld [vmem:[%s2] sm:$0x1]
      %v50 = vlaneseq
      %v51 = vshrl.u32 %v50, 7
      %v52 = vsub.s32 0, %v51
      %v53 = vrot.slane %v48, %v52
      %55 = vst [vmem:[#allocation2] sm:$0xff] %v53
      %56 = vst [vmem:[#allocation2 + $0x8] sm:$0xff] %v53
    $region25: #{tpu_custom_call.1} parent=1 // pred_fallthru
      _
    %v57 = vld [vmem:[#allocation2] sm:$0xff]
    %v58 = vld [vmem:[#allocation2 + $0x8] sm:$0xff]
    %v59 = vld [vmem:[#allocation3] sm:$0xf]
    %v60 = vld [vmem:[#allocation3 + $0x4] sm:$0xf]
    %v61 = vld [vmem:[#allocation6] sm:$0xf]
    %v62 = vld [vmem:[#allocation6 + $0x4] sm:$0xf]
    %v63 = vld [vmem:[#allocation6 + $0x8] sm:$0xf]
    %v64 = vld [vmem:[#allocation6 + $0xc] sm:$0xf]
    %v65 = vld [vmem:[#allocation6 + $0x10] sm:$0xf]
    %v66 = vld [vmem:[#allocation6 + $0x14] sm:$0xf]
    %v67 = vld [vmem:[#allocation6 + $0x18] sm:$0xf]
    %v68 = vld [vmem:[#allocation6 + $0x1c] sm:$0xf]
    %v69 = vld [vmem:[#allocation6 + $0x20] sm:$0xf]
    %v70 = vld [vmem:[#allocation6 + $0x24] sm:$0xf]
    %v71 = vld [vmem:[#allocation6 + $0x28] sm:$0xf]
    %v72 = vld [vmem:[#allocation6 + $0x2c] sm:$0xf]
    %v73 = vld [vmem:[#allocation6 + $0x30] sm:$0xf]
    %v74 = vld [vmem:[#allocation6 + $0x34] sm:$0xf]
    %v75 = vld [vmem:[#allocation6 + $0x38] sm:$0xf]
    %v76 = vld [vmem:[#allocation6 + $0x3c] sm:$0xf]
    %v79 = vunpack.c.l.b16 %v59
    %v80 = vunpack.c.l.b16 %v60
    %v81 = vpack.c.b16 %v80, %v79
    %v99 = vunpack.c.l.b16 %v61
    %v100 = vunpack.c.l.b16 %v62
    %v101 = vunpack.c.l.b16 %v63
    %v102 = vunpack.c.l.b16 %v64
    %v103 = vunpack.c.l.b16 %v65
    %v104 = vunpack.c.l.b16 %v66
    %v105 = vunpack.c.l.b16 %v67
    %v106 = vunpack.c.l.b16 %v68
    %v107 = vunpack.c.l.b16 %v69
    %v108 = vunpack.c.l.b16 %v70
    %v109 = vunpack.c.l.b16 %v71
    %v110 = vunpack.c.l.b16 %v72
    %v111 = vunpack.c.l.b16 %v73
    %v112 = vunpack.c.l.b16 %v74
    %v113 = vunpack.c.l.b16 %v75
    %v114 = vunpack.c.l.b16 %v76
    %v115 = vpack.c.b16 %v100, %v99
    %v116 = vpack.c.b16 %v102, %v101
    %v117 = vpack.c.b16 %v104, %v103
    %v118 = vpack.c.b16 %v106, %v105
    %v119 = vpack.c.b16 %v108, %v107
    %v120 = vpack.c.b16 %v110, %v109
    %v121 = vpack.c.b16 %v112, %v111
    %v122 = vpack.c.b16 %v114, %v113
    %131 = vmatprep.subr.bf16.mxu0 0
    %132 = vmatpush1.bf16.msra.mxu0 %v115
    %133 = vmatprep.subr.bf16.mxu0 0
    %134 = vmatpush1.bf16.msra.mxu0 %v116
    %135 = vmatprep.subr.bf16.mxu0 0
    %136 = vmatpush1.bf16.msra.mxu0 %v117
    %137 = vmatprep.subr.bf16.mxu0 0
    %138 = vmatpush1.bf16.msra.mxu0 %v118
    %139 = vmatprep.subr.bf16.mxu0 0
    %140 = vmatpush1.bf16.msra.mxu0 %v119
    %141 = vmatprep.subr.bf16.mxu0 0
    %142 = vmatpush1.bf16.msra.mxu0 %v120
    %143 = vmatprep.subr.bf16.mxu0 0
    %144 = vmatpush1.bf16.msra.mxu0 %v121
    %145 = vmatprep.subr.bf16.mxu0 0
    %146 = vmatpush1.bf16.msra.mxu0 %v122
    %147 = vmatprep.subr.bf16.mxu0 0
    %148 = vmatpush1.bf16.msra.mxu0 0
    %149 = vmatprep.subr.bf16.mxu0 0
    %150 = vmatpush1.bf16.msra.mxu0 0
    %151 = vmatprep.subr.bf16.mxu0 0
    %152 = vmatpush1.bf16.msra.mxu0 0
    %153 = vmatprep.subr.bf16.mxu0 0
    %154 = vmatpush1.bf16.msra.mxu0 0
    %155 = vmatprep.subr.bf16.mxu0 0
    %156 = vmatpush1.bf16.msra.mxu0 0
    %157 = vmatprep.subr.bf16.mxu0 0
    %158 = vmatpush1.bf16.msra.mxu0 0
    %159 = vmatprep.subr.bf16.mxu0 0
    %160 = vmatpush1.bf16.msra.mxu0 0
    %161 = vmatprep.subr.bf16.mxu0 0
    %162 = vmatpush1.bf16.msra.mxu0 0
    %163 = vmatprep.mubr.bf16.mxu0 0
    %164 = vmatmul.mubr.bf16.gmra.mrb[0].mxu0 %v81
    %v165 = vpop.f32.mrb[0].mxu0
    %v166 = vadd.f32 0.0, %v165
    %v167 = vpop.f32.mrb[0].mxu0
    %v168 = vpop.f32.mrb[0].mxu0
    %v169 = vadd.f32 0.0, %v168
    %v170 = vpop.f32.mrb[0].mxu0
    %171 = vdwg.mxu0
    %v172 = vadd.f32 %v57, %v166
    %v173 = vadd.f32 %v58, %v169
    %174 = vst [vmem:[#allocation2] sm:$0xff] %v172
    %175 = vst [vmem:[#allocation2 + $0x8] sm:$0xff] %v173
    // Predicated region
    $region26: #{tpu_custom_call.1} parent=1 // pred_check
      %p176 = pneg %p44
    $region27: #{tpu_custom_call.1} parent=1 // pred_check_branch
      %178 = sbr.rel (%p176) target = $region29
    $region28: #{tpu_custom_call.1} parent=1 // pred_region
      %v179 = vld [vmem:[#allocation2] sm:$0xff]
      %v180 = vld [vmem:[#allocation2 + $0x8] sm:$0xff]
      %v181 = vmax.f32 %v179, 0.0
      %v182 = vmax.f32 %v180, 0.0
      %183 = vst [vmem:[#allocation8] sm:$0xff] %v181
      %184 = vst [vmem:[#allocation8 + $0x8] sm:$0xff] %v182
    $region29: #{tpu_custom_call.1} parent=1 // pred_fallthru
      _
    // Predicated region
    $region30: #{tpu_custom_call.1} parent=1 // pred_check
      _
    $region31: #{tpu_custom_call.1} parent=1 // pred_check_branch
      %186 = sbr.rel (0) target = $region33
    $region32: #{tpu_custom_call.1} parent=1 // pred_region
      %s188 = ssub.s32 256, 256
      %189 = vsyncadd [#allocation5], %s188
      %s190 = sshll.u32 [#allocation8], 4
      %s191 = int_to_ptr.vmem [resolvable:$true] %s190
      %196 = dma.vmem_to_hbm [thread:$0]  %s191, 256, %s3, [#allocation5], 128, 128, 8
    $region33: #{tpu_custom_call.1} parent=1 // pred_fallthru
      _
    // Predicated region
    $region34: #{tpu_custom_call.1} parent=1 // pred_check
      _
    $region35: #{tpu_custom_call.1} parent=1 // pred_check_branch
      %198 = sbr.rel (0) target = $region37
    $region36: #{tpu_custom_call.1} parent=1 // pred_region
      %199 = dma.done [#allocation5], 256
    $region37: #{tpu_custom_call.1} parent=1 // pred_fallthru
      _
    %200 = vsyncpa [#allocation4], 1
    %201 = vsyncpa [#allocation7], 1
    %202 = vsyncpa [#allocation5], 1

</llo_original>
